<compile_context>
chip_gen: v7x
topology: tpu7x:2x2x1
jax: 0.10.0
libtpu: 0.0.40
codegen_flags: <defaults>
</compile_context>

<pallas_src>
import jax
import jax.numpy as jnp
from jax.experimental import pallas as pl
from jax.experimental.pallas import tpu as pltpu

TARGET_BLOCK_BYTES = 4 * 1024 * 1024   # ~4 MiB per buffer (16 MiB double-buffered in+out)
VMEM_LIMIT_BYTES = 32 * 1024 * 1024    # explicit: safe on v5e/v6e (128 MiB) and v7x (64 MiB)
LANE = 128
MAX_LANE = 2048


def _pila_coeffs(k):
    kf = float(k)
    # (k, a, b, c, d, m, n) with the module's defaults a=k^2/2, b=-k, c=1, d=0, m=1, n=0
    return kf, kf * kf / 2.0, -kf, 1.0, 0.0, 1.0, 0.0


def _make_pila_kernel(k):
    """Elementwise kernel with all coefficients baked in as constants."""
    kf, a, b, c, d, m, n = _pila_coeffs(k)

    def kernel(x_ref, o_ref):
        x = x_ref[...].astype(jnp.float32)          # f32 math regardless of input dtype
        poly = ((a * x + b) * x + c) * x
        if d != 0.0:                                # elided for module defaults
            poly = poly + d
        # Clamp exp arg so the unselected branch never produces inf/nan.
        neg = poly * jnp.exp(kf * jnp.minimum(x, 0.0))
        if m == 1.0 and n == 0.0:                   # module defaults -> pos branch is just x
            pos = x
        else:
            pos = m * x + n
        o_ref[...] = jnp.where(x < 0.0, neg, pos).astype(o_ref.dtype)

    return kernel


def _pila_jnp(x, k):
    """Pure-JAX reference (also used for the tiny ragged-tail epilogue)."""
    kf, a, b, c, d, m, n = _pila_coeffs(k)
    xf = x.astype(jnp.float32)
    poly = ((a * xf + b) * xf + c) * xf + d
    neg = poly * jnp.exp(kf * jnp.minimum(xf, 0.0))
    pos = m * xf + n
    return jnp.where(xf < 0.0, neg, pos).astype(x.dtype)


def _choose_lane_width(total):
    """A multiple of 128 (<= MAX_LANE) that exactly divides `total`; 0 if none."""
    if total % 1024 == 0:
        return 1024
    best = 0
    c = LANE
    while c <= MAX_LANE:
        if total % c == 0:
            best = c
        c += LANE
    return best


def _pila_2d(x2d, k):
    """Run the Pallas kernel over a lane-dense (rows, cols) slab."""
    rows, cols = x2d.shape
    itemsize = x2d.dtype.itemsize
    sublane = max(8, 32 // itemsize)                # 8 f32, 16 bf16, 32 int8/fp8

    # Size the block in bytes, rounded to the sublane packing.
    target_rows = max(sublane,
                      (TARGET_BLOCK_BYTES // (cols * itemsize)) // sublane * sublane)
    if rows > target_rows:
        block_rows = target_rows
    elif rows >= 2 * sublane:
        # Small slab: still give the grid >=2 steps so both v7x TCs get work.
        half = -(-rows // 2)
        block_rows = -(-half // sublane) * sublane
    else:
        block_rows = rows                           # single full-extent block
    grid = (-(-rows // block_rows),)

    total = rows * cols
    cost = pl.CostEstimate(flops=8 * total,
                           transcendentals=total,
                           bytes_accessed=2 * total * itemsize)

    return pl.pallas_call(
        _make_pila_kernel(k),
        out_shape=jax.ShapeDtypeStruct((rows, cols), x2d.dtype),
        grid_spec=pltpu.PrefetchScalarGridSpec(
            num_scalar_prefetch=0,
            grid=grid,
            in_specs=[pl.BlockSpec((block_rows, cols), lambda i: (i, 0))],
            out_specs=pl.BlockSpec((block_rows, cols), lambda i: (i, 0)),
        ),
        compiler_params=pltpu.CompilerParams(
            dimension_semantics=("parallel",),
            vmem_limit_bytes=VMEM_LIMIT_BYTES,
        ),
        cost_estimate=cost,
    )(x2d)


def pila(x, k=5):
    """Elementwise Pila activation. Any shape; returns same shape/dtype."""
    orig_shape = x.shape
    flat = x.reshape(-1)
    total = flat.shape[0]
    if total == 0:
        return x

    cols = _choose_lane_width(total)
    if cols:
        # Exact factoring: one pallas_call, exactly 1 HBM read + 1 HBM write.
        out2d = _pila_2d(flat.reshape(total // cols, cols), k)
        return out2d.reshape(orig_shape)

    # No 128-divisible factoring: kernel on the bulk, tiny jnp op on the
    # (<1024-element) ragged tail.  No full-tensor pad / slice.
    main_len = (total // 1024) * 1024
    if main_len == 0:
        return _pila_jnp(flat, k).reshape(orig_shape)
    main_out = _pila_2d(flat[:main_len].reshape(main_len // 1024, 1024), k).reshape(-1)
    tail_out = _pila_jnp(flat[main_len:], k)
    return jnp.concatenate([main_out, tail_out]).reshape(orig_shape)


if __name__ == "__main__":
    key = jax.random.PRNGKey(0)
    key0, key1 = jax.random.split(key)

    # NCHW-style input consistent with how Pila is used after convs.
    x = jax.random.normal(key0, (2, 4, 16, 16), dtype=jnp.float32)
    y = jax.block_until_ready(pila(x, k=5))
    y_ref = _pila_jnp(x, k=5)
    assert y.shape == x.shape and y.dtype == x.dtype
    assert jnp.allclose(y, y_ref, atol=1e-5, rtol=1e-5), "mismatch vs reference"

    # Also exercise the non-128-divisible fallback path (kernel bulk + jnp tail).
    x2 = jax.random.normal(key1, (1, 3, 32, 37), dtype=jnp.float32)
    y2 = jax.block_until_ready(pila(x2, k=5))
    assert jnp.allclose(y2, _pila_jnp(x2, k=5), atol=1e-5, rtol=1e-5), "fallback mismatch"

    print("KERNEL_OK")
</pallas_src>

<mosaic_0001>
module attributes {stable_mosaic.version = 11 : i64} {
  func.func @kernel(%arg0: i32, %arg1: memref<2x1024xf32, #tpu.memory_space<vmem>>, %arg2: memref<2x1024xf32, #tpu.memory_space<vmem>>) attributes {dimension_semantics = [#tpu.dimension_semantics<parallel>], iteration_bounds = array<i64: 1>, scalar_prefetch = 0 : i64, scratch_operands = 0 : i64, tpu.core_type = #tpu.core_type<tc>, window_params = [{transform_indices = @transform_0, window_bounds = array<i64: 2, 1024>}, {transform_indices = @transform_1, window_bounds = array<i64: 2, 1024>}]} {
    %c0 = arith.constant 0 : index
    %c0_0 = arith.constant 0 : index
    %0 = vector.load %arg1[%c0, %c0_0] : memref<2x1024xf32, #tpu.memory_space<vmem>>, vector<2x1024xf32>
    %cst = arith.constant 1.250000e+01 : f32
    %1 = vector.broadcast %cst : f32 to vector<2x1024xf32>
    %2 = arith.mulf %1, %0 : vector<2x1024xf32>
    %cst_1 = arith.constant -5.000000e+00 : f32
    %3 = vector.broadcast %cst_1 : f32 to vector<2x1024xf32>
    %4 = arith.addf %2, %3 : vector<2x1024xf32>
    %5 = arith.mulf %4, %0 : vector<2x1024xf32>
    %cst_2 = arith.constant 1.000000e+00 : f32
    %6 = vector.broadcast %cst_2 : f32 to vector<2x1024xf32>
    %7 = arith.addf %5, %6 : vector<2x1024xf32>
    %8 = arith.mulf %7, %0 : vector<2x1024xf32>
    %cst_3 = arith.constant 0.000000e+00 : f32
    %9 = vector.broadcast %cst_3 : f32 to vector<2x1024xf32>
    %10 = arith.minimumf %0, %9 : vector<2x1024xf32>
    %cst_4 = arith.constant 5.000000e+00 : f32
    %11 = vector.broadcast %cst_4 : f32 to vector<2x1024xf32>
    %12 = arith.mulf %11, %10 : vector<2x1024xf32>
    %13 = math.exp %12 : vector<2x1024xf32>
    %14 = arith.mulf %8, %13 : vector<2x1024xf32>
    %cst_5 = arith.constant 0.000000e+00 : f32
    %15 = vector.broadcast %cst_5 : f32 to vector<2x1024xf32>
    %16 = arith.cmpf olt, %0, %15 : vector<2x1024xf32>
    %17 = arith.select %16, %14, %0 : vector<2x1024xi1>, vector<2x1024xf32>
    %c0_6 = arith.constant 0 : index
    %c0_7 = arith.constant 0 : index
    %18 = vector.load %arg2[%c0_6, %c0_7] : memref<2x1024xf32, #tpu.memory_space<vmem>>, vector<2x1024xf32>
    tpu.vector_store %arg2[%c0_6, %c0_7], %17 {strides = array<i32>} : memref<2x1024xf32, #tpu.memory_space<vmem>>, vector<2x1024xf32>,
    return
  }
  func.func @transform_0(%arg0: i32) -> (i32, i32) {
    %c0_i32 = arith.constant 0 : i32
    %c0_i32_0 = arith.constant 0 : i32
    return %arg0, %c0_i32 : i32, i32
  }
  func.func @transform_1(%arg0: i32) -> (i32, i32) {
    %c0_i32 = arith.constant 0 : i32
    %c0_i32_0 = arith.constant 0 : i32
    return %arg0, %c0_i32 : i32, i32
  }
}

</mosaic_0001>

<llo_original>
// kernel: tpu_custom_call.1
$region0: #{tpu_custom_call.1}
  #allocation0 [shape = 'u32[]', space=smem, size = 0x4, offset = 0x4, fixed_abs, tag = 'smem constant byte address 0x4 - core index']
  #allocation1 [shape = 'u32[144,128]{1,0:T(1,128)}', space=vmem, size = 0x12000, scoped, tag = 'internal scratch']
  %s0 = inlined_call_operand.hbm [shape: f32[2,1024], index: 0, kind: input, shape index: {}]
  %s1 = inlined_call_operand.hbm [shape: f32[2,1024], index: 1, kind: output, shape index: {}]
  %s2 = sld [smem:[#allocation0]]
  $region18: #{tpu_custom_call.1} parent=0
    _
  %s4 = ssub.s32 1, %s2
  %s5 = scalar_select 0, %s4, %s2
  $region1: #{tpu_custom_call.1} parent=0
    #allocation2 [shape = 'u8[8192]{0}', space=vmem, size = 0x2000, scoped, tag = 'input window, operand 0, single buffered']
    #allocation3 [shape = 's32[1]{0}', space=sflag, size = 0x4, scoped, tag = 'scoped memory for tpu_custom_call.1']
    #allocation4 [shape = 's32[1]{0}', space=sflag, size = 0x4, scoped, tag = 'scoped memory for tpu_custom_call.1']
    #allocation5 [shape = 'u8[8192]{0}', space=vmem, size = 0x2000, scoped, tag = 'output window, operand 0, single buffered']
    %6 = vsyncpa [#allocation3], 0
    %7 = vsyncpa [#allocation4], 0
    // Predicated region
    $region2: #{tpu_custom_call.1} parent=1 // pred_check
      _
    $region3: #{tpu_custom_call.1} parent=1 // pred_check_branch
      %9 = sbr.rel (0) target = $region5
    $region4: #{tpu_custom_call.1} parent=1 // pred_region
      %s11 = ssub.s32 256, 256
      %12 = vsyncadd [#allocation3], %s11
      %s14 = sshll.u32 [#allocation2], 4
      %s15 = int_to_ptr.vmem [resolvable:$true] %s14
      %17 = dma.hbm_to_vmem [thread:$0]  %s0, 256, %s15, [#allocation3]
    $region5: #{tpu_custom_call.1} parent=1 // pred_fallthru
      _
    // Predicated region
    $region6: #{tpu_custom_call.1} parent=1 // pred_check
      _
    $region7: #{tpu_custom_call.1} parent=1 // pred_check_branch
      %19 = sbr.rel (0) target = $region9
    $region8: #{tpu_custom_call.1} parent=1 // pred_region
      %20 = dma.done [#allocation3], 256
    $region9: #{tpu_custom_call.1} parent=1 // pred_fallthru
      _
    %v21 = vld [vmem:[#allocation2] sm:$0xff]
    %v22 = vld [vmem:[#allocation2 + $0x8] sm:$0xff]
    %v23 = vmul.f32 %v21, 12.5
    %v24 = vmul.f32 %v22, 12.5
    %v25 = vadd.f32 %v23, -5.0
    %v26 = vadd.f32 %v24, -5.0
    %v27 = vmul.f32 %v25, %v21
    %v28 = vmul.f32 %v26, %v22
    %v29 = vadd.f32 %v27, 1.0
    %v30 = vadd.f32 %v28, 1.0
    %v31 = vmul.f32 %v29, %v21
    %v32 = vmul.f32 %v30, %v22
    %v33 = vmin.f32 %v21, 0.0
    %v34 = vmin.f32 %v22, 0.0
    %v35 = vmul.f32 %v33, 5.0
    %v36 = vmul.f32 %v34, 5.0
    %v37 = vmul.f32 %v35, 1.442695
    %v38 = vpow.pop %v37
    %v39 = vmul.f32 %v36, 1.442695
    %v40 = vpow.pop %v39
    %v41 = vmul.f32 %v31, %v38
    %v42 = vmul.f32 %v32, %v40
    %vm43 = vcmp.lt.f32.partialorder %v21, 0.0
    %vm44 = vcmp.lt.f32.partialorder %v22, 0.0
    %v45 = vsel %vm43, %v41, %v21
    %v46 = vsel %vm44, %v42, %v22
    %47 = vst [vmem:[#allocation5] sm:$0xff] %v45
    %48 = vst [vmem:[#allocation5 + $0x8] sm:$0xff] %v46
    // Predicated region
    $region10: #{tpu_custom_call.1} parent=1 // pred_check
      _
    $region11: #{tpu_custom_call.1} parent=1 // pred_check_branch
      %50 = sbr.rel (0) target = $region13
    $region12: #{tpu_custom_call.1} parent=1 // pred_region
      %s52 = ssub.s32 256, 256
      %53 = vsyncadd [#allocation4], %s52
      %s55 = sshll.u32 [#allocation5], 4
      %s56 = int_to_ptr.vmem [resolvable:$true] %s55
      %58 = dma.vmem_to_hbm [thread:$0]  %s56, 256, %s1, [#allocation4]
    $region13: #{tpu_custom_call.1} parent=1 // pred_fallthru
      _
    // Predicated region
    $region14: #{tpu_custom_call.1} parent=1 // pred_check
      _
    $region15: #{tpu_custom_call.1} parent=1 // pred_check_branch
      %60 = sbr.rel (0) target = $region17
    $region16: #{tpu_custom_call.1} parent=1 // pred_region
      %61 = dma.done [#allocation4], 256
    $region17: #{tpu_custom_call.1} parent=1 // pred_fallthru
      _
    %62 = vsyncpa [#allocation3], 1
    %63 = vsyncpa [#allocation4], 1

</llo_original>
